<compile_context>
chip_gen: v7x
topology: tpu7x:2x2x1
jax: 0.10.0
libtpu: 0.0.40
codegen_flags: <defaults>
</compile_context>

<pallas_src>
import jax
import jax.numpy as jnp
import numpy as np
from jax.experimental import pallas as pl
from jax.experimental.pallas import tpu as pltpu

# Keep host-side matmuls (reference check) at full f32 accuracy.
jax.config.update("jax_default_matmul_precision", "highest")

# ---- problem sizes (small, consistent with an OCP layer) -------------------
BATCH = 8      # batch of initial states x0
NX = 4         # state dimension
NU = 2         # control dimension
HORIZON = 8    # OCP horizon N

# ---- packed layout constants ------------------------------------------------
LANES = 128                         # one full f32 vreg of lanes
X_COLS = (HORIZON + 1) * NX         # 36  -> x_0..x_H flattened
U_COLS = HORIZON * NU               # 16  -> u_0..u_{H-1} flattened
XU_COLS = X_COLS + U_COLS           # 52
P0_OFF = XU_COLS                    # W columns 52:56 hold P0^T (for the value)
VALUE_COL = XU_COLS                 # output slab lane 52 holds the value
assert P0_OFF + NX <= LANES


# ---- Pallas kernel: whole forward = one padded matmul ------------------------
def _lqr_forward_kernel(x0_ref, w_ref, out_ref):
    """out = [x0 @ W with value spliced into lane VALUE_COL, zero-padded to 128]."""
    x = x0_ref[...].astype(jnp.float32)                 # (BATCH, NX)
    w = w_ref[...]                                      # (NX, LANES)

    # Single MXU pass; contraction (NX=4) is padded by HW but that is pure
    # latency in one vex slot, far cheaper than a serial chain of VPU/XLU MACs.
    y = jnp.dot(x, w, preferred_element_type=jnp.float32,
                precision=jax.lax.Precision.HIGHEST)    # (BATCH, LANES)

    # Exact LQR identity: V(x0) = 0.5 * x0^T P0 x0.  y[:, P0_OFF:P0_OFF+NX]
    # already holds x0 @ P0^T, so only a tiny 4-lane reduce remains.
    # TODO(synk): once constraints / u0 pinning / parameter conditioning from the
    # real acados layer are added, this identity (and the gain hoisting) breaks
    # and per-stage cost accumulation must return.
    px = y[:, P0_OFF:P0_OFF + NX]                       # (BATCH, NX)
    val = 0.5 * jnp.sum(px * x, axis=-1, keepdims=True)  # (BATCH, 1)

    # Build the lane-dense output slab in registers (two vsel on one vreg) and
    # emit it with a single unmasked full-vreg store.
    lane = jax.lax.broadcasted_iota(jnp.int32, (BATCH, LANES), 1)
    slab = jnp.where(lane == VALUE_COL, val,
                     jnp.where(lane < XU_COLS, y, 0.0))
    out_ref[...] = slab.astype(out_ref.dtype)


def lqr_forward_pallas(x0, W):
    """Run the whole batched forward in a single (grid-less) Pallas program.

    # TODO(synk): if BATCH grows beyond toy size, add a leading batch grid axis
    # blocked in multiples of 8 sublanes (>=512 rows/block), mark it
    # dimension_semantics=("parallel",) (2 TensorCores on v7x), and size blocks
    # against v7x's 64 MiB physical VMEM (not the 128 MiB of v5e/v6e).
    """
    slab = pl.pallas_call(
        _lqr_forward_kernel,
        out_shape=jax.ShapeDtypeStruct((BATCH, LANES), jnp.float32),
        in_specs=[
            pl.BlockSpec(memory_space=pltpu.MemorySpace.VMEM),  # x0
            pl.BlockSpec(memory_space=pltpu.MemorySpace.VMEM),  # packed W
        ],
        out_specs=pl.BlockSpec(memory_space=pltpu.MemorySpace.VMEM),
    )(x0, W)

    # Contiguous reshapes of the lane-packed [time*feat] axis (no transpose).
    x_traj = slab[:, :X_COLS].reshape(BATCH, HORIZON + 1, NX)
    u_traj = slab[:, X_COLS:XU_COLS].reshape(BATCH, HORIZON, NU)
    u0 = u_traj[:, 0, :]
    value = slab[:, VALUE_COL]
    return x_traj, u_traj, u0, value


# ---- "OCP setup": Riccati + full algebraic hoisting (host-side, float64) ----
def riccati_setup(A, B, Q, R, Qf, horizon):
    """Returns (K, W).

    K : (H, NU, NX) optimal gains (kept for the pure-JAX reference check).
    W : (NX, 128) packed weight matrix, columns:
          [ 0:36)  Phi_t^T  (x_t = Phi_t x0,  Phi_0 = I)
          [36:52)  G_t^T    (u_t = -K_t Phi_t x0)
          [52:56)  P0^T     (value = 0.5 x0' P0 x0)
          [56:128) zeros
    All products composed in float64 to avoid rounding growth, then cast to f32.
    """
    A64 = np.asarray(A, np.float64)
    B64 = np.asarray(B, np.float64)
    Q64 = np.asarray(Q, np.float64)
    R64 = np.asarray(R, np.float64)
    P = np.asarray(Qf, np.float64)

    gains = []
    for _ in range(horizon):
        BtP = B64.T @ P
        K = np.linalg.solve(R64 + BtP @ B64, BtP @ A64)    # (NU, NX)
        P = Q64 + A64.T @ P @ (A64 - B64 @ K)
        gains.append(K)
    gains.reverse()                                        # K_0 .. K_{H-1}
    P0 = P

    # Hoist the time recursion: Phi_0 = I, Phi_{t+1} = (A - B K_t) Phi_t.
    Phi = np.eye(NX, dtype=np.float64)
    phis = [Phi]
    Gs = []
    for t in range(horizon):
        K_t = gains[t]
        Gs.append(-K_t @ Phi)                              # u_t = G_t x0
        Phi = (A64 - B64 @ K_t) @ Phi                      # Phi_{t+1}
        phis.append(Phi)

    W = np.zeros((NX, LANES), dtype=np.float64)
    for t in range(horizon + 1):
        W[:, t * NX:(t + 1) * NX] = phis[t].T
    for t in range(horizon):
        W[:, X_COLS + t * NU: X_COLS + (t + 1) * NU] = Gs[t].T
    W[:, P0_OFF:P0_OFF + NX] = P0.T

    Kstack = jnp.asarray(np.stack(gains, axis=0), jnp.float32)  # (H, NU, NX)
    return Kstack, jnp.asarray(W, jnp.float32)


def make_ocp_params():
    """Deterministic synthetic OCP (stand-in for the acados formulation)."""
    key = jax.random.PRNGKey(0)
    ka, kb = jax.random.split(key)
    A = jnp.eye(NX, dtype=jnp.float32) + 0.1 * jax.random.normal(ka, (NX, NX), jnp.float32)
    B = 0.5 * jax.random.normal(kb, (NX, NU), jnp.float32)
    Q = jnp.eye(NX, dtype=jnp.float32)
    R = 0.1 * jnp.eye(NU, dtype=jnp.float32)
    Qf = 2.0 * jnp.eye(NX, dtype=jnp.float32)
    return A, B, Q, R, Qf


# ---- layer-level wrapper mirroring AcadosImplicitLayer.forward --------------
class AcadosImplicitLayerPallas:
    def __init__(self):
        self.A, self.B, self.Q, self.R, self.Qf = make_ocp_params()
        self.K, self.W = riccati_setup(self.A, self.B, self.Q, self.R, self.Qf, HORIZON)

    def forward(self, x0, u0=None, p_global=None, p_stagewise=None,
                p_stagewise_sparse_idx=None, ctx=None):
        # TODO(synk): u0 pinning / p_global / p_stagewise conditioning of the OCP and
        # ctx-based warm starting of the acados SQP solver have no Pallas equivalent.
        x, u, u0_out, value = lqr_forward_pallas(x0, self.W)
        ctx_out = None   # placeholder for AcadosImplicitCtx
        return ctx_out, u0_out, x, u, value

    def sensitivity(self, ctx, field_name):
        # TODO(synk): adjoint / sensitivity OCP not implemented in this synthetic kernel.
        raise NotImplementedError


# ---- pure-JAX reference for correctness check -------------------------------
def lqr_rollout_ref(x0, A, B, Q, R, Qf, K):
    x = x0
    xs = [x]
    us = []
    val = jnp.zeros((x0.shape[0],), jnp.float32)
    for t in range(HORIZON):
        u = -(x @ K[t].T)
        val = val + 0.5 * (jnp.sum((x @ Q) * x, -1) + jnp.sum((u @ R) * u, -1))
        x = x @ A.T + u @ B.T
        us.append(u)
        xs.append(x)
    val = val + 0.5 * jnp.sum((x @ Qf) * x, -1)
    return jnp.stack(xs, 1), jnp.stack(us, 1), val


if __name__ == "__main__":
    layer = AcadosImplicitLayerPallas()

    key = jax.random.PRNGKey(0)
    x0 = jax.random.normal(key, (BATCH, NX), jnp.float32)

    ctx, u0, x, u, value = layer.forward(x0)
    jax.block_until_ready((u0, x, u, value))

    x_ref, u_ref, v_ref = lqr_rollout_ref(
        x0, layer.A, layer.B, layer.Q, layer.R, layer.Qf, layer.K)

    assert x.shape == (BATCH, HORIZON + 1, NX)
    assert u.shape == (BATCH, HORIZON, NU)
    assert u0.shape == (BATCH, NU)
    assert value.shape == (BATCH,)
    assert jnp.allclose(x, x_ref, atol=1e-4, rtol=1e-4)
    assert jnp.allclose(u, u_ref, atol=1e-4, rtol=1e-4)
    assert jnp.allclose(u0, u_ref[:, 0, :], atol=1e-4, rtol=1e-4)
    assert jnp.allclose(value, v_ref, atol=1e-4, rtol=1e-4)

    print("KERNEL_OK")
</pallas_src>

<mosaic_0001>
module attributes {stable_mosaic.version = 11 : i64} {
  func.func @_lqr_forward_kernel(%arg0: memref<8x4xf32, #tpu.memory_space<vmem>>, %arg1: memref<4x128xf32, #tpu.memory_space<vmem>>, %arg2: memref<8x128xf32, #tpu.memory_space<vmem>>) attributes {dimension_semantics = [], scalar_prefetch = 0 : i64, scratch_operands = 0 : i64, tpu.core_type = #tpu.core_type<tc>} {
    %c0 = arith.constant 0 : index
    %c0_0 = arith.constant 0 : index
    %0 = vector.load %arg0[%c0, %c0_0] : memref<8x4xf32, #tpu.memory_space<vmem>>, vector<8x4xf32>
    %c0_1 = arith.constant 0 : index
    %c0_2 = arith.constant 0 : index
    %1 = vector.load %arg1[%c0_1, %c0_2] : memref<4x128xf32, #tpu.memory_space<vmem>>, vector<4x128xf32>
    %cst = arith.constant dense<0.000000e+00> : vector<8x128xf32>
    %2 = tpu.matmul %0, %1, %cst {dimension_numbers = #tpu.dot_dimension_numbers<[1], [0], [0], [1], [0, 0, 1, 1], [], []>, precision = #tpu.contract_precision<fp32>} : vector<8x4xf32>, vector<4x128xf32>, vector<8x128xf32> -> vector<8x128xf32>
    %3 = vector.extract_strided_slice %2 {offsets = [0, 52], sizes = [8, 4], strides = [1, 1]} : vector<8x128xf32> to vector<8x4xf32>
    %4 = arith.mulf %3, %0 : vector<8x4xf32>
    %cst_3 = arith.constant dense<0.000000e+00> : vector<8xf32>
    %5 = vector.multi_reduction <add>, %4, %cst_3 [1] : vector<8x4xf32> to vector<8xf32>
    %6 = vector.shape_cast %5 : vector<8xf32> to vector<8x1xf32>
    %cst_4 = arith.constant 5.000000e-01 : f32
    %7 = vector.broadcast %cst_4 : f32 to vector<8x1xf32>
    %8 = arith.mulf %7, %6 : vector<8x1xf32>
    %9 = tpu.iota {dimensions = array<i32: 1>} : vector<8x128xi32>
    %c52_i32 = arith.constant 52 : i32
    %10 = vector.broadcast %c52_i32 : i32 to vector<8x128xi32>
    %11 = arith.cmpi eq, %9, %10 : vector<8x128xi32>
    %c52_i32_5 = arith.constant 52 : i32
    %12 = vector.broadcast %c52_i32_5 : i32 to vector<8x128xi32>
    %13 = arith.cmpi slt, %9, %12 : vector<8x128xi32>
    %cst_6 = arith.constant 0.000000e+00 : f32
    %14 = vector.broadcast %cst_6 : f32 to vector<8x128xf32>
    %15 = arith.select %13, %2, %14 : vector<8x128xi1>, vector<8x128xf32>
    %16 = vector.shape_cast %8 : vector<8x1xf32> to vector<8x1xf32>
    %17 = vector.broadcast %16 : vector<8x1xf32> to vector<8x128xf32>
    %18 = arith.select %11, %17, %15 : vector<8x128xi1>, vector<8x128xf32>
    %c0_7 = arith.constant 0 : index
    %c0_8 = arith.constant 0 : index
    %19 = vector.load %arg2[%c0_7, %c0_8] : memref<8x128xf32, #tpu.memory_space<vmem>>, vector<8x128xf32>
    tpu.vector_store %arg2[%c0_7, %c0_8], %18 {strides = array<i32>} : memref<8x128xf32, #tpu.memory_space<vmem>>, vector<8x128xf32>,
    return
  }
}

</mosaic_0001>

<llo_original>
// kernel: tpu_custom_call.1
$region0: #{tpu_custom_call.1}
  #allocation0 [shape = 'u32[]', space=smem, size = 0x4, offset = 0x4, fixed_abs, tag = 'smem constant byte address 0x4 - core index']
  #allocation1 [shape = 'u32[144,128]{1,0:T(1,128)}', space=vmem, size = 0x12000, scoped, tag = 'internal scratch']
  %s0 = inlined_call_operand.vmem [shape: f32[8,4], index: 0, kind: input, shape index: {}]
  %s1 = inlined_call_operand.vmem [shape: f32[4,128], index: 1, kind: input, shape index: {}]
  %s2 = inlined_call_operand.hbm [shape: f32[8,128], index: 2, kind: output, shape index: {}]
  %s3 = sld [smem:[#allocation0]]
  $region18: #{tpu_custom_call.1} parent=0
    _
  %s5 = ssub.s32 1, %s3
  %s6 = scalar_select 0, %s5, %s3
  $region1: #{tpu_custom_call.1} parent=0
    #allocation2 [shape = 'u8[4096]{0}', space=vmem, size = 0x1000, scoped, tag = 'output window, operand 0, single buffered']
    #allocation3 [shape = 's32[1]{0}', space=sflag, size = 0x4, scoped, tag = 'scoped memory for tpu_custom_call.1']
    %7 = vsyncpa [#allocation3], 0
    // Predicated region
    $region2: #{tpu_custom_call.1} parent=1 // pred_check
      _
    $region3: #{tpu_custom_call.1} parent=1 // pred_check_branch
      %9 = sbr.rel (0) target = $region5
    $region4: #{tpu_custom_call.1} parent=1 // pred_region
      _
    $region5: #{tpu_custom_call.1} parent=1 // pred_fallthru
      _
    // Predicated region
    $region6: #{tpu_custom_call.1} parent=1 // pred_check
      _
    $region7: #{tpu_custom_call.1} parent=1 // pred_check_branch
      %11 = sbr.rel (0) target = $region9
    $region8: #{tpu_custom_call.1} parent=1 // pred_region
      _
    $region9: #{tpu_custom_call.1} parent=1 // pred_fallthru
      _
    %v12 = vld [vmem:[%s0] sm:$0xff]
    %v13 = vld [vmem:[%s1] sm:$0xf]
    %vm14 = vcmask 31744
    %v16 = vsel %vm14, %v12, 0
    %vm18 = vcmask 1043456
    %v20 = vsel %vm18, %v13, 0
    %22 = vmatprep.subr.mxu0 0.0
    %v23 = vand.u32 %v20, 4294901760
    %24 = vmatpush1.msra.mxu0 %v23
    %25 = vmatprep.subr.mxu0 0.0
    %26 = vmatpush1.msra.mxu0 0.0
    %27 = vmatprep.subr.mxu0 0.0
    %28 = vmatpush1.msra.mxu0 0.0
    %29 = vmatprep.subr.mxu0 0.0
    %30 = vmatpush1.msra.mxu0 0.0
    %31 = vmatprep.subr.mxu0 0.0
    %32 = vmatpush1.msra.mxu0 0.0
    %33 = vmatprep.subr.mxu0 0.0
    %34 = vmatpush1.msra.mxu0 0.0
    %35 = vmatprep.subr.mxu0 0.0
    %36 = vmatpush1.msra.mxu0 0.0
    %37 = vmatprep.subr.mxu0 0.0
    %38 = vmatpush1.msra.mxu0 0.0
    %39 = vmatprep.subr.mxu0 0.0
    %40 = vmatpush1.msra.mxu0 0.0
    %41 = vmatprep.subr.mxu0 0.0
    %42 = vmatpush1.msra.mxu0 0.0
    %43 = vmatprep.subr.mxu0 0.0
    %44 = vmatpush1.msra.mxu0 0.0
    %45 = vmatprep.subr.mxu0 0.0
    %46 = vmatpush1.msra.mxu0 0.0
    %47 = vmatprep.subr.mxu0 0.0
    %48 = vmatpush1.msra.mxu0 0.0
    %49 = vmatprep.subr.mxu0 0.0
    %50 = vmatpush1.msra.mxu0 0.0
    %51 = vmatprep.subr.mxu0 0.0
    %52 = vmatpush1.msra.mxu0 0.0
    %53 = vmatprep.subr.mxu0 0.0
    %54 = vmatpush1.msra.mxu0 0.0
    %55 = vmatprep.subr.mxu0 0.0
    %56 = vmatpush1.msra.mxu0 0.0
    %57 = vmatprep.subr.mxu0 0.0
    %58 = vmatpush1.msra.mxu0 0.0
    %59 = vmatprep.subr.mxu0 0.0
    %60 = vmatpush1.msra.mxu0 0.0
    %61 = vmatprep.subr.mxu0 0.0
    %62 = vmatpush1.msra.mxu0 0.0
    %63 = vmatprep.subr.mxu0 0.0
    %64 = vmatpush1.msra.mxu0 0.0
    %65 = vmatprep.subr.mxu0 0.0
    %66 = vmatpush1.msra.mxu0 0.0
    %67 = vmatprep.subr.mxu0 0.0
    %68 = vmatpush1.msra.mxu0 0.0
    %69 = vmatprep.subr.mxu0 0.0
    %70 = vmatpush1.msra.mxu0 0.0
    %71 = vmatprep.subr.mxu0 0.0
    %72 = vmatpush1.msra.mxu0 0.0
    %73 = vmatprep.subr.mxu0 0.0
    %74 = vmatpush1.msra.mxu0 0.0
    %75 = vmatprep.subr.mxu0 0.0
    %76 = vmatpush1.msra.mxu0 0.0
    %77 = vmatprep.subr.mxu0 0.0
    %78 = vmatpush1.msra.mxu0 0.0
    %79 = vmatprep.subr.mxu0 0.0
    %80 = vmatpush1.msra.mxu0 0.0
    %81 = vmatprep.subr.mxu0 0.0
    %82 = vmatpush1.msra.mxu0 0.0
    %83 = vmatprep.subr.mxu0 0.0
    %84 = vmatpush1.msra.mxu0 0.0
    %85 = vmatprep.subr.mxu0 0.0
    %86 = vmatpush1.msra.mxu0 0.0
    %87 = vmatprep.mubr.f32.mxu0 0.0
    %v88 = vand.u32 %v16, 4294901760
    %v89 = vsub.f32 %v16, %v88
    %v90 = vand.u32 %v89, 4294901760
    %v91 = vsub.f32 %v89, %v90
    %v92 = vand.u32 %v91, 4294901760
    %93 = vmatmul.mubr.f32.gmra.mrb[0].mxu0 %v92
    %v94 = vpop.f32.mrb[0].mxu0
    %v95 = vadd.f32 0.0, %v94
    %v96 = vpop.f32.mrb[0].mxu0
    %97 = vdwg.mxu0
    %98 = vmatprep.subr.mxu0 0.0
    %v99 = vand.u32 %v20, 4294901760
    %v100 = vsub.f32 %v20, %v99
    %v101 = vand.u32 %v100, 4294901760
    %v102 = vsub.f32 %v100, %v101
    %v103 = vand.u32 %v102, 4294901760
    %104 = vmatpush1.msra.mxu0 %v103
    %105 = vmatprep.subr.mxu0 0.0
    %106 = vmatpush1.msra.mxu0 0.0
    %107 = vmatprep.subr.mxu0 0.0
    %108 = vmatpush1.msra.mxu0 0.0
    %109 = vmatprep.subr.mxu0 0.0
    %110 = vmatpush1.msra.mxu0 0.0
    %111 = vmatprep.subr.mxu0 0.0
    %112 = vmatpush1.msra.mxu0 0.0
    %113 = vmatprep.subr.mxu0 0.0
    %114 = vmatpush1.msra.mxu0 0.0
    %115 = vmatprep.subr.mxu0 0.0
    %116 = vmatpush1.msra.mxu0 0.0
    %117 = vmatprep.subr.mxu0 0.0
    %118 = vmatpush1.msra.mxu0 0.0
    %119 = vmatprep.subr.mxu0 0.0
    %120 = vmatpush1.msra.mxu0 0.0
    %121 = vmatprep.subr.mxu0 0.0
    %122 = vmatpush1.msra.mxu0 0.0
    %123 = vmatprep.subr.mxu0 0.0
    %124 = vmatpush1.msra.mxu0 0.0
    %125 = vmatprep.subr.mxu0 0.0
    %126 = vmatpush1.msra.mxu0 0.0
    %127 = vmatprep.subr.mxu0 0.0
    %128 = vmatpush1.msra.mxu0 0.0
    %129 = vmatprep.subr.mxu0 0.0
    %130 = vmatpush1.msra.mxu0 0.0
    %131 = vmatprep.subr.mxu0 0.0
    %132 = vmatpush1.msra.mxu0 0.0
    %133 = vmatprep.subr.mxu0 0.0
    %134 = vmatpush1.msra.mxu0 0.0
    %135 = vmatprep.subr.mxu0 0.0
    %136 = vmatpush1.msra.mxu0 0.0
    %137 = vmatprep.subr.mxu0 0.0
    %138 = vmatpush1.msra.mxu0 0.0
    %139 = vmatprep.subr.mxu0 0.0
    %140 = vmatpush1.msra.mxu0 0.0
    %141 = vmatprep.subr.mxu0 0.0
    %142 = vmatpush1.msra.mxu0 0.0
    %143 = vmatprep.subr.mxu0 0.0
    %144 = vmatpush1.msra.mxu0 0.0
    %145 = vmatprep.subr.mxu0 0.0
    %146 = vmatpush1.msra.mxu0 0.0
    %147 = vmatprep.subr.mxu0 0.0
    %148 = vmatpush1.msra.mxu0 0.0
    %149 = vmatprep.subr.mxu0 0.0
    %150 = vmatpush1.msra.mxu0 0.0
    %151 = vmatprep.subr.mxu0 0.0
    %152 = vmatpush1.msra.mxu0 0.0
    %153 = vmatprep.subr.mxu0 0.0
    %154 = vmatpush1.msra.mxu0 0.0
    %155 = vmatprep.subr.mxu0 0.0
    %156 = vmatpush1.msra.mxu0 0.0
    %157 = vmatprep.subr.mxu0 0.0
    %158 = vmatpush1.msra.mxu0 0.0
    %159 = vmatprep.subr.mxu0 0.0
    %160 = vmatpush1.msra.mxu0 0.0
    %161 = vmatprep.subr.mxu0 0.0
    %162 = vmatpush1.msra.mxu0 0.0
    %163 = vmatprep.subr.mxu0 0.0
    %164 = vmatpush1.msra.mxu0 0.0
    %165 = vmatprep.subr.mxu0 0.0
    %166 = vmatpush1.msra.mxu0 0.0
    %167 = vmatprep.mubr.f32.mxu0 0.0
    %v168 = vand.u32 %v16, 4294901760
    %169 = vmatmul.mubr.f32.gmra.mrb[0].mxu0 %v168
    %v170 = vpop.f32.mrb[0].mxu0
    %v171 = vadd.f32 %v95, %v170
    %v172 = vpop.f32.mrb[0].mxu0
    %173 = vdwg.mxu0
    %174 = vmatprep.subr.mxu0 0.0
    %v175 = vand.u32 %v20, 4294901760
    %v176 = vsub.f32 %v20, %v175
    %177 = vmatpush1.msra.mxu0 %v176
    %178 = vmatprep.subr.mxu0 0.0
    %179 = vmatpush1.msra.mxu0 0.0
    %180 = vmatprep.subr.mxu0 0.0
    %181 = vmatpush1.msra.mxu0 0.0
    %182 = vmatprep.subr.mxu0 0.0
    %183 = vmatpush1.msra.mxu0 0.0
    %184 = vmatprep.subr.mxu0 0.0
    %185 = vmatpush1.msra.mxu0 0.0
    %186 = vmatprep.subr.mxu0 0.0
    %187 = vmatpush1.msra.mxu0 0.0
    %188 = vmatprep.subr.mxu0 0.0
    %189 = vmatpush1.msra.mxu0 0.0
    %190 = vmatprep.subr.mxu0 0.0
    %191 = vmatpush1.msra.mxu0 0.0
    %192 = vmatprep.subr.mxu0 0.0
    %193 = vmatpush1.msra.mxu0 0.0
    %194 = vmatprep.subr.mxu0 0.0
    %195 = vmatpush1.msra.mxu0 0.0
    %196 = vmatprep.subr.mxu0 0.0
    %197 = vmatpush1.msra.mxu0 0.0
    %198 = vmatprep.subr.mxu0 0.0
    %199 = vmatpush1.msra.mxu0 0.0
    %200 = vmatprep.subr.mxu0 0.0
    %201 = vmatpush1.msra.mxu0 0.0
    %202 = vmatprep.subr.mxu0 0.0
    %203 = vmatpush1.msra.mxu0 0.0
    %204 = vmatprep.subr.mxu0 0.0
    %205 = vmatpush1.msra.mxu0 0.0
    %206 = vmatprep.subr.mxu0 0.0
    %207 = vmatpush1.msra.mxu0 0.0
    %208 = vmatprep.subr.mxu0 0.0
    %209 = vmatpush1.msra.mxu0 0.0
    %210 = vmatprep.subr.mxu0 0.0
    %211 = vmatpush1.msra.mxu0 0.0
    %212 = vmatprep.subr.mxu0 0.0
    %213 = vmatpush1.msra.mxu0 0.0
    %214 = vmatprep.subr.mxu0 0.0
    %215 = vmatpush1.msra.mxu0 0.0
    %216 = vmatprep.subr.mxu0 0.0
    %217 = vmatpush1.msra.mxu0 0.0
    %218 = vmatprep.subr.mxu0 0.0
    %219 = vmatpush1.msra.mxu0 0.0
    %220 = vmatprep.subr.mxu0 0.0
    %221 = vmatpush1.msra.mxu0 0.0
    %222 = vmatprep.subr.mxu0 0.0
    %223 = vmatpush1.msra.mxu0 0.0
    %224 = vmatprep.subr.mxu0 0.0
    %225 = vmatpush1.msra.mxu0 0.0
    %226 = vmatprep.subr.mxu0 0.0
    %227 = vmatpush1.msra.mxu0 0.0
    %228 = vmatprep.subr.mxu0 0.0
    %229 = vmatpush1.msra.mxu0 0.0
    %230 = vmatprep.subr.mxu0 0.0
    %231 = vmatpush1.msra.mxu0 0.0
    %232 = vmatprep.subr.mxu0 0.0
    %233 = vmatpush1.msra.mxu0 0.0
    %234 = vmatprep.subr.mxu0 0.0
    %235 = vmatpush1.msra.mxu0 0.0
    %236 = vmatprep.subr.mxu0 0.0
    %237 = vmatpush1.msra.mxu0 0.0
    %238 = vmatprep.subr.mxu0 0.0
    %239 = vmatpush1.msra.mxu0 0.0
    %240 = vmatprep.mubr.f32.mxu0 0.0
    %v241 = vand.u32 %v16, 4294901760
    %v242 = vsub.f32 %v16, %v241
    %243 = vmatmul.mubr.f32.gmra.mrb[0].mxu0 %v242
    %v244 = vpop.f32.mrb[0].mxu0
    %v245 = vadd.f32 %v171, %v244
    %v246 = vpop.f32.mrb[0].mxu0
    %247 = vdwg.mxu0
    %248 = vmatprep.subr.mxu0 0.0
    %v249 = vand.u32 %v20, 4294901760
    %250 = vmatpush1.msra.mxu0 %v249
    %251 = vmatprep.subr.mxu0 0.0
    %252 = vmatpush1.msra.mxu0 0.0
    %253 = vmatprep.subr.mxu0 0.0
    %254 = vmatpush1.msra.mxu0 0.0
    %255 = vmatprep.subr.mxu0 0.0
    %256 = vmatpush1.msra.mxu0 0.0
    %257 = vmatprep.subr.mxu0 0.0
    %258 = vmatpush1.msra.mxu0 0.0
    %259 = vmatprep.subr.mxu0 0.0
    %260 = vmatpush1.msra.mxu0 0.0
    %261 = vmatprep.subr.mxu0 0.0
    %262 = vmatpush1.msra.mxu0 0.0
    %263 = vmatprep.subr.mxu0 0.0
    %264 = vmatpush1.msra.mxu0 0.0
    %265 = vmatprep.subr.mxu0 0.0
    %266 = vmatpush1.msra.mxu0 0.0
    %267 = vmatprep.subr.mxu0 0.0
    %268 = vmatpush1.msra.mxu0 0.0
    %269 = vmatprep.subr.mxu0 0.0
    %270 = vmatpush1.msra.mxu0 0.0
    %271 = vmatprep.subr.mxu0 0.0
    %272 = vmatpush1.msra.mxu0 0.0
    %273 = vmatprep.subr.mxu0 0.0
    %274 = vmatpush1.msra.mxu0 0.0
    %275 = vmatprep.subr.mxu0 0.0
    %276 = vmatpush1.msra.mxu0 0.0
    %277 = vmatprep.subr.mxu0 0.0
    %278 = vmatpush1.msra.mxu0 0.0
    %279 = vmatprep.subr.mxu0 0.0
    %280 = vmatpush1.msra.mxu0 0.0
    %281 = vmatprep.subr.mxu0 0.0
    %282 = vmatpush1.msra.mxu0 0.0
    %283 = vmatprep.subr.mxu0 0.0
    %284 = vmatpush1.msra.mxu0 0.0
    %285 = vmatprep.subr.mxu0 0.0
    %286 = vmatpush1.msra.mxu0 0.0
    %287 = vmatprep.subr.mxu0 0.0
    %288 = vmatpush1.msra.mxu0 0.0
    %289 = vmatprep.subr.mxu0 0.0
    %290 = vmatpush1.msra.mxu0 0.0
    %291 = vmatprep.subr.mxu0 0.0
    %292 = vmatpush1.msra.mxu0 0.0
    %293 = vmatprep.subr.mxu0 0.0
    %294 = vmatpush1.msra.mxu0 0.0
    %295 = vmatprep.subr.mxu0 0.0
    %296 = vmatpush1.msra.mxu0 0.0
    %297 = vmatprep.subr.mxu0 0.0
    %298 = vmatpush1.msra.mxu0 0.0
    %299 = vmatprep.subr.mxu0 0.0
    %300 = vmatpush1.msra.mxu0 0.0
    %301 = vmatprep.subr.mxu0 0.0
    %302 = vmatpush1.msra.mxu0 0.0
    %303 = vmatprep.subr.mxu0 0.0
    %304 = vmatpush1.msra.mxu0 0.0
    %305 = vmatprep.subr.mxu0 0.0
    %306 = vmatpush1.msra.mxu0 0.0
    %307 = vmatprep.subr.mxu0 0.0
    %308 = vmatpush1.msra.mxu0 0.0
    %309 = vmatprep.subr.mxu0 0.0
    %310 = vmatpush1.msra.mxu0 0.0
    %311 = vmatprep.subr.mxu0 0.0
    %312 = vmatpush1.msra.mxu0 0.0
    %313 = vmatprep.mubr.f32.mxu0 0.0
    %v314 = vand.u32 %v16, 4294901760
    %v315 = vsub.f32 %v16, %v314
    %v316 = vand.u32 %v315, 4294901760
    %317 = vmatmul.mubr.f32.gmra.mrb[0].mxu0 %v316
    %v318 = vpop.f32.mrb[0].mxu0
    %v319 = vadd.f32 %v245, %v318
    %v320 = vpop.f32.mrb[0].mxu0
    %321 = vdwg.mxu0
    %322 = vmatprep.subr.mxu0 0.0
    %v323 = vand.u32 %v20, 4294901760
    %v324 = vsub.f32 %v20, %v323
    %v325 = vand.u32 %v324, 4294901760
    %326 = vmatpush1.msra.mxu0 %v325
    %327 = vmatprep.subr.mxu0 0.0
    %328 = vmatpush1.msra.mxu0 0.0
    %329 = vmatprep.subr.mxu0 0.0
    %330 = vmatpush1.msra.mxu0 0.0
    %331 = vmatprep.subr.mxu0 0.0
    %332 = vmatpush1.msra.mxu0 0.0
    %333 = vmatprep.subr.mxu0 0.0
    %334 = vmatpush1.msra.mxu0 0.0
    %335 = vmatprep.subr.mxu0 0.0
    %336 = vmatpush1.msra.mxu0 0.0
    %337 = vmatprep.subr.mxu0 0.0
    %338 = vmatpush1.msra.mxu0 0.0
    %339 = vmatprep.subr.mxu0 0.0
    %340 = vmatpush1.msra.mxu0 0.0
    %341 = vmatprep.subr.mxu0 0.0
    %342 = vmatpush1.msra.mxu0 0.0
    %343 = vmatprep.subr.mxu0 0.0
    %344 = vmatpush1.msra.mxu0 0.0
    %345 = vmatprep.subr.mxu0 0.0
    %346 = vmatpush1.msra.mxu0 0.0
    %347 = vmatprep.subr.mxu0 0.0
    %348 = vmatpush1.msra.mxu0 0.0
    %349 = vmatprep.subr.mxu0 0.0
    %350 = vmatpush1.msra.mxu0 0.0
    %351 = vmatprep.subr.mxu0 0.0
    %352 = vmatpush1.msra.mxu0 0.0
    %353 = vmatprep.subr.mxu0 0.0
    %354 = vmatpush1.msra.mxu0 0.0
    %355 = vmatprep.subr.mxu0 0.0
    %356 = vmatpush1.msra.mxu0 0.0
    %357 = vmatprep.subr.mxu0 0.0
    %358 = vmatpush1.msra.mxu0 0.0
    %359 = vmatprep.subr.mxu0 0.0
    %360 = vmatpush1.msra.mxu0 0.0
    %361 = vmatprep.subr.mxu0 0.0
    %362 = vmatpush1.msra.mxu0 0.0
    %363 = vmatprep.subr.mxu0 0.0
    %364 = vmatpush1.msra.mxu0 0.0
    %365 = vmatprep.subr.mxu0 0.0
    %366 = vmatpush1.msra.mxu0 0.0
    %367 = vmatprep.subr.mxu0 0.0
    %368 = vmatpush1.msra.mxu0 0.0
    %369 = vmatprep.subr.mxu0 0.0
    %370 = vmatpush1.msra.mxu0 0.0
    %371 = vmatprep.subr.mxu0 0.0
    %372 = vmatpush1.msra.mxu0 0.0
    %373 = vmatprep.subr.mxu0 0.0
    %374 = vmatpush1.msra.mxu0 0.0
    %375 = vmatprep.subr.mxu0 0.0
    %376 = vmatpush1.msra.mxu0 0.0
    %377 = vmatprep.subr.mxu0 0.0
    %378 = vmatpush1.msra.mxu0 0.0
    %379 = vmatprep.subr.mxu0 0.0
    %380 = vmatpush1.msra.mxu0 0.0
    %381 = vmatprep.subr.mxu0 0.0
    %382 = vmatpush1.msra.mxu0 0.0
    %383 = vmatprep.subr.mxu0 0.0
    %384 = vmatpush1.msra.mxu0 0.0
    %385 = vmatprep.subr.mxu0 0.0
    %386 = vmatpush1.msra.mxu0 0.0
    %387 = vmatprep.subr.mxu0 0.0
    %388 = vmatpush1.msra.mxu0 0.0
    %389 = vmatprep.mubr.f32.mxu0 0.0
    %v390 = vand.u32 %v16, 4294901760
    %391 = vmatmul.mubr.f32.gmra.mrb[0].mxu0 %v390
    %v392 = vpop.f32.mrb[0].mxu0
    %v393 = vadd.f32 %v319, %v392
    %v394 = vpop.f32.mrb[0].mxu0
    %395 = vdwg.mxu0
    %396 = vmatprep.subr.mxu0 0.0
    %v397 = vand.u32 %v20, 4294901760
    %398 = vmatpush1.msra.mxu0 %v397
    %399 = vmatprep.subr.mxu0 0.0
    %400 = vmatpush1.msra.mxu0 0.0
    %401 = vmatprep.subr.mxu0 0.0
    %402 = vmatpush1.msra.mxu0 0.0
    %403 = vmatprep.subr.mxu0 0.0
    %404 = vmatpush1.msra.mxu0 0.0
    %405 = vmatprep.subr.mxu0 0.0
    %406 = vmatpush1.msra.mxu0 0.0
    %407 = vmatprep.subr.mxu0 0.0
    %408 = vmatpush1.msra.mxu0 0.0
    %409 = vmatprep.subr.mxu0 0.0
    %410 = vmatpush1.msra.mxu0 0.0
    %411 = vmatprep.subr.mxu0 0.0
    %412 = vmatpush1.msra.mxu0 0.0
    %413 = vmatprep.subr.mxu0 0.0
    %414 = vmatpush1.msra.mxu0 0.0
    %415 = vmatprep.subr.mxu0 0.0
    %416 = vmatpush1.msra.mxu0 0.0
    %417 = vmatprep.subr.mxu0 0.0
    %418 = vmatpush1.msra.mxu0 0.0
    %419 = vmatprep.subr.mxu0 0.0
    %420 = vmatpush1.msra.mxu0 0.0
    %421 = vmatprep.subr.mxu0 0.0
    %422 = vmatpush1.msra.mxu0 0.0
    %423 = vmatprep.subr.mxu0 0.0
    %424 = vmatpush1.msra.mxu0 0.0
    %425 = vmatprep.subr.mxu0 0.0
    %426 = vmatpush1.msra.mxu0 0.0
    %427 = vmatprep.subr.mxu0 0.0
    %428 = vmatpush1.msra.mxu0 0.0
    %429 = vmatprep.subr.mxu0 0.0
    %430 = vmatpush1.msra.mxu0 0.0
    %431 = vmatprep.subr.mxu0 0.0
    %432 = vmatpush1.msra.mxu0 0.0
    %433 = vmatprep.subr.mxu0 0.0
    %434 = vmatpush1.msra.mxu0 0.0
    %435 = vmatprep.subr.mxu0 0.0
    %436 = vmatpush1.msra.mxu0 0.0
    %437 = vmatprep.subr.mxu0 0.0
    %438 = vmatpush1.msra.mxu0 0.0
    %439 = vmatprep.subr.mxu0 0.0
    %440 = vmatpush1.msra.mxu0 0.0
    %441 = vmatprep.subr.mxu0 0.0
    %442 = vmatpush1.msra.mxu0 0.0
    %443 = vmatprep.subr.mxu0 0.0
    %444 = vmatpush1.msra.mxu0 0.0
    %445 = vmatprep.subr.mxu0 0.0
    %446 = vmatpush1.msra.mxu0 0.0
    %447 = vmatprep.subr.mxu0 0.0
    %448 = vmatpush1.msra.mxu0 0.0
    %449 = vmatprep.subr.mxu0 0.0
    %450 = vmatpush1.msra.mxu0 0.0
    %451 = vmatprep.subr.mxu0 0.0
    %452 = vmatpush1.msra.mxu0 0.0
    %453 = vmatprep.subr.mxu0 0.0
    %454 = vmatpush1.msra.mxu0 0.0
    %455 = vmatprep.subr.mxu0 0.0
    %456 = vmatpush1.msra.mxu0 0.0
    %457 = vmatprep.subr.mxu0 0.0
    %458 = vmatpush1.msra.mxu0 0.0
    %459 = vmatprep.subr.mxu0 0.0
    %460 = vmatpush1.msra.mxu0 0.0
    %461 = vmatprep.mubr.f32.mxu0 0.0
    %v462 = vand.u32 %v16, 4294901760
    %463 = vmatmul.mubr.f32.gmra.mrb[0].mxu0 %v462
    %v464 = vpop.f32.mrb[0].mxu0
    %v465 = vadd.f32 %v393, %v464
    %v466 = vpop.f32.mrb[0].mxu0
    %467 = vdwg.mxu0
    %468 = vrot.lane.b32.xlu0 %v12, 52
    %v469 = vpop.permute.xlu0 %468
    %v471 = vmul.f32 %v465, %v469
    %473 = vrot.lane.b32.xlu0 %v471, 76
    %v474 = vpop.permute.xlu0 %473
    %v476 = vsel %vm14, %v474, 0.0
    %477 = vadd.xlane.f32.xlu0 %v476
    %v478 = vpop.xlane.xlu0 %477
    %v479 = vmul.f32 %v478, 0.5
    %v480 = vlaneseq
    %v481 = vand.u32 %v480, 127
    %vm482 = vcmp.eq.s32.totalorder %v481, 52
    %vm483 = vcmp.lt.s32.totalorder %v481, 52
    %v484 = vsel %vm483, %v465, 0.0
    %v485 = vsel %vm482, %v479, %v484
    %486 = vst [vmem:[#allocation2] sm:$0xff] %v485
    // Predicated region
    $region10: #{tpu_custom_call.1} parent=1 // pred_check
      _
    $region11: #{tpu_custom_call.1} parent=1 // pred_check_branch
      %488 = sbr.rel (0) target = $region13
    $region12: #{tpu_custom_call.1} parent=1 // pred_region
      %s490 = ssub.s32 128, 128
      %491 = vsyncadd [#allocation3], %s490
      %s493 = sshll.u32 [#allocation2], 4
      %s494 = int_to_ptr.vmem [resolvable:$true] %s493
      %496 = dma.vmem_to_hbm [thread:$0]  %s494, 128, %s2, [#allocation3]
    $region13: #{tpu_custom_call.1} parent=1 // pred_fallthru
      _
    // Predicated region
    $region14: #{tpu_custom_call.1} parent=1 // pred_check
      _
    $region15: #{tpu_custom_call.1} parent=1 // pred_check_branch
      %498 = sbr.rel (0) target = $region17
    $region16: #{tpu_custom_call.1} parent=1 // pred_region
      %499 = dma.done [#allocation3], 128
    $region17: #{tpu_custom_call.1} parent=1 // pred_fallthru
      _
    %500 = vsyncpa [#allocation3], 1

</llo_original>
